<compile_context>
chip_gen: v7x
topology: tpu7x:2x2x1
jax: 0.10.0
libtpu: 0.0.40
codegen_flags: <defaults>
</compile_context>

<pallas_src>
import functools

import jax
import jax.numpy as jnp
import numpy as np
from jax import lax
from jax.experimental import pallas as pl
from jax.experimental.pallas import tpu as pltpu


def _round_up(x: int, m: int) -> int:
    return (x + m - 1) // m * m


def _style_loss_kernel(f_ref, t_ref, o_ref, acc_ref, *, inv_gram_div, inv_mse_count):
    k = pl.program_id(0)

    @pl.when(k == 0)
    def _init():
        acc_ref[...] = jnp.zeros_like(acc_ref)

    f = f_ref[...]
    # F_k @ F_k.T on the MXU: contract the K (lane) axis of both operands
    # directly (no XLU vxpose), accumulate in f32.
    acc_ref[...] += lax.dot_general(
        f, f,
        dimension_numbers=(((1,), (1,)), ((), ())),
        preferred_element_type=jnp.float32,
    )

    @pl.when(k == pl.num_programs(0) - 1)
    def _finalize():
        g = acc_ref[...] * inv_gram_div            # 1/(a*b*c*d), true divisor
        diff = g - t_ref[...]
        loss = jnp.sum(diff * diff) * inv_mse_count  # mean over true M*M
        o_ref[...] = jnp.zeros_like(o_ref) + loss    # lane-dense broadcast store


def pallas_style_loss(x, target_gram, *, feature_dtype=jnp.bfloat16, target_tk=2048):
    """Fused gram-matrix + MSE style loss.  Returns an f32 scalar."""
    a, b, c, d = x.shape
    M, K = a * b, c * d
    assert target_gram.shape == (M, M)

    # Pad M to the bf16 sublane-packing multiple; pad K to a multiple of tk.
    Mp = _round_up(M, 16)
    tk = min(int(target_tk), _round_up(K, 128))
    Kp = _round_up(K, tk)
    if Mp > 1024:
        # TODO(synk): tile the (i, j) gram axes (upper triangle only) for very
        # large M; the resident-accumulator design assumes Mp*Mp fits in VMEM.
        raise NotImplementedError("StyleLoss Pallas kernel assumes a*b <= 1024")

    # Zero-padding K is exact for F @ F.T; padded M rows/cols of G and target
    # are zero so they do not perturb the MSE sum (divisors use true M, K).
    feats = jnp.pad(x.reshape(M, K), ((0, Mp - M), (0, Kp - K))).astype(feature_dtype)
    tgt = jnp.pad(target_gram.astype(jnp.float32), ((0, Mp - M), (0, Mp - M)))

    inv_gram_div = 1.0 / float(a * b * c * d)
    inv_mse_count = 1.0 / float(M * M)

    kernel = functools.partial(
        _style_loss_kernel,
        inv_gram_div=inv_gram_div,
        inv_mse_count=inv_mse_count,
    )

    # VMEM budget: double-buffered bf16 feature stream + resident target + f32
    # accumulator + lane-dense output.  Cap well under v7x's 64 MiB VMEM.
    feat_bytes = Mp * tk * jnp.dtype(feature_dtype).itemsize
    vmem_est = 2 * feat_bytes + 2 * (Mp * Mp * 4) + (Mp * Mp * 4) + 2 * (8 * 128 * 4)
    vmem_limit = int(min(48 * 1024 * 1024, max(8 * 1024 * 1024, 4 * vmem_est)))

    out = pl.pallas_call(
        kernel,
        out_shape=jax.ShapeDtypeStruct((8, 128), jnp.float32),
        grid_spec=pltpu.PrefetchScalarGridSpec(
            num_scalar_prefetch=0,
            grid=(Kp // tk,),
            in_specs=[
                # Feature stream: one (Mp, tk) block per K step (read once).
                pl.BlockSpec((Mp, tk), lambda k: (0, k)),
                # Target gram: k-invariant block index -> stays VMEM-resident.
                pl.BlockSpec((Mp, Mp), lambda k: (0, 0)),
            ],
            out_specs=pl.BlockSpec((8, 128), lambda k: (0, 0)),
            scratch_shapes=[pltpu.VMEM((Mp, Mp), jnp.float32)],
        ),
        compiler_params=pltpu.CompilerParams(
            dimension_semantics=("arbitrary",),   # K is the reduction axis
            vmem_limit_bytes=vmem_limit,
        ),
    )(feats, tgt)
    return out[0, 0]


def gram_matrix_ref(x):
    """Plain-JAX gram matrix (used once at init for the target, like PyTorch)."""
    a, b, c, d = x.shape
    f = x.reshape(a * b, c * d).astype(jnp.float32)
    g = lax.dot_general(f, f, (((1,), (1,)), ((), ())),
                        preferred_element_type=jnp.float32)
    return g / (a * b * c * d)


class StyleLoss:
    """JAX/Pallas analog of the PyTorch StyleLoss module."""

    def __init__(self, target_feature, name):
        self.target = gram_matrix_ref(target_feature)   # init-time, "detached"
        self.name = name
        self.loss = None

    def __call__(self, x):
        self.loss = pallas_style_loss(x, self.target)
        return x                                        # forward pass-through


def _loss_reference(x, target_gram, feature_dtype):
    """Pure-JAX reference using the same bf16 feature cast as the kernel."""
    a, b, c, d = x.shape
    f = x.reshape(a * b, c * d).astype(feature_dtype)
    g = lax.dot_general(f, f, (((1,), (1,)), ((), ())),
                        preferred_element_type=jnp.float32) / (a * b * c * d)
    return jnp.mean((g - target_gram) ** 2)


if __name__ == "__main__":
    key = jax.random.PRNGKey(0)
    k_t, k_x = jax.random.split(key)
    target_feature = jax.random.normal(k_t, (2, 4, 16, 16), dtype=jnp.float32)
    x = jax.random.normal(k_x, (2, 4, 16, 16), dtype=jnp.float32)

    style = StyleLoss(target_feature, name="style_1")
    out = style(x)                      # forward: returns the input unchanged
    loss = style.loss

    out = jax.block_until_ready(out)
    loss = jax.block_until_ready(loss)

    ref = jax.block_until_ready(_loss_reference(x, style.target, jnp.bfloat16))
    np.testing.assert_allclose(np.asarray(out), np.asarray(x), rtol=0, atol=0)
    np.testing.assert_allclose(float(loss), float(ref), rtol=2e-3, atol=1e-6)

    print("KERNEL_OK")
</pallas_src>

<mosaic_0001>
module attributes {stable_mosaic.version = 11 : i64} {
  func.func @_style_loss_kernel(%arg0: i32, %arg1: memref<16x256xbf16, #tpu.memory_space<vmem>>, %arg2: memref<16x16xf32, #tpu.memory_space<vmem>>, %arg3: memref<8x128xf32, #tpu.memory_space<vmem>>, %arg4: memref<16x16xf32, #tpu.memory_space<vmem>>) attributes {dimension_semantics = [#tpu.dimension_semantics<arbitrary>], iteration_bounds = array<i64: 1>, scalar_prefetch = 0 : i64, scratch_operands = 1 : i64, tpu.core_type = #tpu.core_type<tc>, window_params = [{transform_indices = @transform_0, window_bounds = array<i64: 16, 256>}, {pipeline_mode = #tpu.pipeline_mode<synchronous>, transform_indices = @transform_1, window_bounds = array<i64: 16, 16>}, {pipeline_mode = #tpu.pipeline_mode<synchronous>, transform_indices = @transform_2, window_bounds = array<i64: 8, 128>}]} {
    %c0_i32 = arith.constant 0 : i32
    %0 = arith.cmpi eq, %arg0, %c0_i32 : i32
    %1 = arith.extui %0 : i1 to i32
    %c0_i32_0 = arith.constant 0 : i32
    %2 = arith.cmpi ne, %1, %c0_i32_0 : i32
    scf.if %2 {
      %cst_8 = arith.constant 0.000000e+00 : f32
      %11 = vector.broadcast %cst_8 : f32 to vector<16x16xf32>
      %c0_9 = arith.constant 0 : index
      %c0_10 = arith.constant 0 : index
      %12 = vector.load %arg4[%c0_9, %c0_10] : memref<16x16xf32, #tpu.memory_space<vmem>>, vector<16x16xf32>
      tpu.vector_store %arg4[%c0_9, %c0_10], %11 {strides = array<i32>} : memref<16x16xf32, #tpu.memory_space<vmem>>, vector<16x16xf32>,
    } else {
    }
    %c0 = arith.constant 0 : index
    %c0_1 = arith.constant 0 : index
    %3 = vector.load %arg1[%c0, %c0_1] : memref<16x256xbf16, #tpu.memory_space<vmem>>, vector<16x256xbf16>
    %c0_2 = arith.constant 0 : index
    %c0_3 = arith.constant 0 : index
    %4 = vector.load %arg4[%c0_2, %c0_3] : memref<16x16xf32, #tpu.memory_space<vmem>>, vector<16x16xf32>
    %cst = arith.constant dense<0.000000e+00> : vector<16x16xf32>
    %5 = tpu.matmul %3, %3, %cst {dimension_numbers = #tpu.dot_dimension_numbers<[1], [1], [0], [0], [0, 0, 1, 0], [], []>} : vector<16x256xbf16>, vector<16x256xbf16>, vector<16x16xf32> -> vector<16x16xf32>
    %6 = arith.addf %4, %5 : vector<16x16xf32>
    %c0_4 = arith.constant 0 : index
    %c0_5 = arith.constant 0 : index
    %7 = vector.load %arg4[%c0_4, %c0_5] : memref<16x16xf32, #tpu.memory_space<vmem>>, vector<16x16xf32>
    tpu.vector_store %arg4[%c0_4, %c0_5], %6 {strides = array<i32>} : memref<16x16xf32, #tpu.memory_space<vmem>>, vector<16x16xf32>,
    %c0_i32_6 = arith.constant 0 : i32
    %8 = arith.cmpi eq, %arg0, %c0_i32_6 : i32
    %9 = arith.extui %8 : i1 to i32
    %c0_i32_7 = arith.constant 0 : i32
    %10 = arith.cmpi ne, %9, %c0_i32_7 : i32
    scf.if %10 {
      %c0_8 = arith.constant 0 : index
      %c0_9 = arith.constant 0 : index
      %11 = vector.load %arg4[%c0_8, %c0_9] : memref<16x16xf32, #tpu.memory_space<vmem>>, vector<16x16xf32>
      %cst_10 = arith.constant 4.8828125E-4 : f32
      %12 = vector.broadcast %cst_10 : f32 to vector<16x16xf32>
      %13 = arith.mulf %11, %12 : vector<16x16xf32>
      %c0_11 = arith.constant 0 : index
      %c0_12 = arith.constant 0 : index
      %14 = vector.load %arg2[%c0_11, %c0_12] : memref<16x16xf32, #tpu.memory_space<vmem>>, vector<16x16xf32>
      %15 = arith.subf %13, %14 : vector<16x16xf32>
      %16 = arith.mulf %15, %15 : vector<16x16xf32>
      %17 = vector.shape_cast %16 : vector<16x16xf32> to vector<1x16x16xf32>
      %cst_13 = arith.constant dense<0.000000e+00> : vector<1xf32>
      %18 = vector.multi_reduction <add>, %17, %cst_13 [1, 2] : vector<1x16x16xf32> to vector<1xf32>
      %19 = vector.shape_cast %18 : vector<1xf32> to vector<1x1x1xf32>
      %20 = vector.extract %19[0, 0, 0] : f32 from vector<1x1x1xf32>
      %cst_14 = arith.constant 1.562500e-02 : f32
      %21 = arith.mulf %20, %cst_14 : f32
      %cst_15 = arith.constant 0.000000e+00 : f32
      %22 = vector.broadcast %cst_15 : f32 to vector<8x128xf32>
      %23 = vector.broadcast %21 : f32 to vector<8x128xf32>
      %24 = arith.addf %22, %23 : vector<8x128xf32>
      %c0_16 = arith.constant 0 : index
      %c0_17 = arith.constant 0 : index
      %25 = vector.load %arg3[%c0_16, %c0_17] : memref<8x128xf32, #tpu.memory_space<vmem>>, vector<8x128xf32>
      tpu.vector_store %arg3[%c0_16, %c0_17], %24 {strides = array<i32>} : memref<8x128xf32, #tpu.memory_space<vmem>>, vector<8x128xf32>,
    } else {
    }
    return
  }
  func.func @transform_0(%arg0: i32) -> (i32, i32) {
    %c0_i32 = arith.constant 0 : i32
    %c0_i32_0 = arith.constant 0 : i32
    return %c0_i32, %arg0 : i32, i32
  }
  func.func @transform_1(%arg0: i32) -> (i32, i32) {
    %c0_i32 = arith.constant 0 : i32
    %c0_i32_0 = arith.constant 0 : i32
    %c0_i32_1 = arith.constant 0 : i32
    return %c0_i32, %c0_i32_0 : i32, i32
  }
  func.func @transform_2(%arg0: i32) -> (i32, i32) {
    %c0_i32 = arith.constant 0 : i32
    %c0_i32_0 = arith.constant 0 : i32
    %c0_i32_1 = arith.constant 0 : i32
    return %c0_i32, %c0_i32_0 : i32, i32
  }
}

</mosaic_0001>

<llo_original>
// kernel: tpu_custom_call.1
$region0: #{tpu_custom_call.1}
  #allocation0 [shape = 'u32[]', space=smem, size = 0x4, offset = 0x4, fixed_abs, tag = 'smem constant byte address 0x4 - core index']
  #allocation1 [shape = 'u32[144,128]{1,0:T(1,128)}', space=vmem, size = 0x12000, scoped, tag = 'internal scratch']
  #allocation2 [shape = 'f32[16,16]{1,0:T(8,128)}', space=vmem, size = 0x2000, scoped, tag = 'scratch operand']
  %s0 = inlined_call_operand.hbm [shape: bf16[16,256], index: 0, kind: input, shape index: {}]
  %s1 = inlined_call_operand.hbm [shape: f32[16,16], index: 1, kind: input, shape index: {}]
  %s2 = inlined_call_operand.hbm [shape: f32[8,128], index: 2, kind: output, shape index: {}]
  %s3 = sld [smem:[#allocation0]]
  $region34: #{tpu_custom_call.1} parent=0
    _
  %s5 = ssub.s32 1, %s3
  %s6 = scalar_select 0, %s5, %s3
  $region1: #{tpu_custom_call.1} parent=0
    #allocation3 [shape = 'u8[8192]{0}', space=vmem, size = 0x2000, scoped, tag = 'input window, operand 0, single buffered']
    #allocation4 [shape = 's32[1]{0}', space=sflag, size = 0x4, scoped, tag = 'scoped memory for tpu_custom_call.1']
    #allocation5 [shape = 's32[1]{0}', space=sflag, size = 0x4, scoped, tag = 'scoped memory for tpu_custom_call.1']
    #allocation6 [shape = 'u8[8192]{0}', space=vmem, size = 0x2000, scoped, tag = 'input window, operand 1, single buffered']
    #allocation7 [shape = 's32[1]{0}', space=sflag, size = 0x4, scoped, tag = 'scoped memory for tpu_custom_call.1']
    #allocation8 [shape = 'u8[4096]{0}', space=vmem, size = 0x1000, scoped, tag = 'output window, operand 0, single buffered']
    %7 = vsyncpa [#allocation4], 0
    %8 = vsyncpa [#allocation7], 0
    %9 = vsyncpa [#allocation5], 0
    // Predicated region
    $region2: #{tpu_custom_call.1} parent=1 // pred_check
      _
    $region3: #{tpu_custom_call.1} parent=1 // pred_check_branch
      %11 = sbr.rel (0) target = $region5
    $region4: #{tpu_custom_call.1} parent=1 // pred_region
      %s13 = ssub.s32 256, 256
      %14 = vsyncadd [#allocation4], %s13
      %s15 = sshll.u32 [#allocation3], 4
      %s16 = int_to_ptr.vmem [resolvable:$true] %s15
      %21 = dma.hbm_to_vmem [thread:$0]  %s0, 256, %s16, [#allocation4], 128, 128, 8
    $region5: #{tpu_custom_call.1} parent=1 // pred_fallthru
      _
    // Predicated region
    $region6: #{tpu_custom_call.1} parent=1 // pred_check
      _
    $region7: #{tpu_custom_call.1} parent=1 // pred_check_branch
      %23 = sbr.rel (0) target = $region9
    $region8: #{tpu_custom_call.1} parent=1 // pred_region
      %s25 = ssub.s32 256, 256
      %26 = vsyncadd [#allocation7], %s25
      %s27 = sshll.u32 [#allocation6], 4
      %s28 = int_to_ptr.vmem [resolvable:$true] %s27
      %33 = dma.hbm_to_vmem [thread:$0]  %s1, 256, %s28, [#allocation7], 128, 128, 8
    $region9: #{tpu_custom_call.1} parent=1 // pred_fallthru
      _
    // Predicated region
    $region10: #{tpu_custom_call.1} parent=1 // pred_check
      _
    $region11: #{tpu_custom_call.1} parent=1 // pred_check_branch
      %35 = sbr.rel (0) target = $region13
    $region12: #{tpu_custom_call.1} parent=1 // pred_region
      %36 = dma.done [#allocation4], 256
    $region13: #{tpu_custom_call.1} parent=1 // pred_fallthru
      _
    // Predicated region
    $region14: #{tpu_custom_call.1} parent=1 // pred_check
      _
    $region15: #{tpu_custom_call.1} parent=1 // pred_check_branch
      %38 = sbr.rel (0) target = $region17
    $region16: #{tpu_custom_call.1} parent=1 // pred_region
      %39 = dma.done [#allocation7], 256
    $region17: #{tpu_custom_call.1} parent=1 // pred_fallthru
      _
    %p41 = scmp.eq.s32.totalorder 0, 0
    // Predicated region
    $region18: #{tpu_custom_call.1} parent=1 // pred_check
      %p42 = pneg %p41
    $region19: #{tpu_custom_call.1} parent=1 // pred_check_branch
      %44 = sbr.rel (%p42) target = $region21
    $region20: #{tpu_custom_call.1} parent=1 // pred_region
      %vm45 = vcmask 130048
      %46 = vst.msk [vmem:[#allocation2] sm:$0xff] %vm45, 0.0
      %47 = vst.msk [vmem:[#allocation2 + $0x8] sm:$0xff] %vm45, 0.0
    $region21: #{tpu_custom_call.1} parent=1 // pred_fallthru
      _
    %v48 = vld [vmem:[#allocation3] sm:$0xff]
    %v49 = vld [vmem:[#allocation3 + $0x8] sm:$0xff]
    %v50 = vld [vmem:[#allocation2] sm:$0xff]
    %v51 = vld [vmem:[#allocation2 + $0x8] sm:$0xff]
    %v54 = vunpack.c.l.b16 %v48
    %v55 = vunpack.c.h.b16 %v48
    %v56 = vunpack.c.l.b16 %v49
    %v57 = vunpack.c.h.b16 %v49
    %v58 = vpack.c.b16 %v56, %v54
    %v59 = vpack.c.b16 %v57, %v55
    %62 = vmatprep.subr.bf16.mxu0 %v59
    %63 = vmatpush1.bf16.xpose.msra.mxu0 %v58
    %64 = vmatprep.subr.bf16.mxu0 0
    %65 = vmatpush1.bf16.xpose.msra.mxu0 0
    %66 = vmatprep.subr.bf16.mxu0 0
    %67 = vmatpush1.bf16.xpose.msra.mxu0 0
    %68 = vmatprep.subr.bf16.mxu0 0
    %69 = vmatpush1.bf16.xpose.msra.mxu0 0
    %70 = vmatprep.subr.bf16.mxu0 0
    %71 = vmatpush1.bf16.xpose.msra.mxu0 0
    %72 = vmatprep.subr.bf16.mxu0 0
    %73 = vmatpush1.bf16.xpose.msra.mxu0 0
    %74 = vmatprep.subr.bf16.mxu0 0
    %75 = vmatpush1.bf16.xpose.msra.mxu0 0
    %76 = vmatprep.subr.bf16.mxu0 0
    %77 = vmatpush1.bf16.xpose.msra.mxu0 0
    %78 = vmatprep.subr.bf16.mxu0 0
    %79 = vmatpush1.bf16.xpose.msra.mxu0 0
    %80 = vmatprep.subr.bf16.mxu0 0
    %81 = vmatpush1.bf16.xpose.msra.mxu0 0
    %82 = vmatprep.subr.bf16.mxu0 0
    %83 = vmatpush1.bf16.xpose.msra.mxu0 0
    %84 = vmatprep.subr.bf16.mxu0 0
    %85 = vmatpush1.bf16.xpose.msra.mxu0 0
    %86 = vmatprep.subr.bf16.mxu0 0
    %87 = vmatpush1.bf16.xpose.msra.mxu0 0
    %88 = vmatprep.subr.bf16.mxu0 0
    %89 = vmatpush1.bf16.xpose.msra.mxu0 0
    %90 = vmatprep.subr.bf16.mxu0 0
    %91 = vmatpush1.bf16.xpose.msra.mxu0 0
    %92 = vmatprep.subr.bf16.mxu0 0
    %93 = vmatpush1.bf16.xpose.msra.mxu0 0
    %94 = vmatprep.mubr.bf16.mxu0 %v59
    %95 = vmatmul.mubr.bf16.gmra.mrb[0].mxu0 %v58
    %v96 = vpop.f32.mrb[0].mxu0
    %v97 = vadd.f32 0.0, %v96
    %v98 = vpop.f32.mrb[0].mxu0
    %v99 = vpop.f32.mrb[0].mxu0
    %v100 = vadd.f32 0.0, %v99
    %v101 = vpop.f32.mrb[0].mxu0
    %102 = vdwg.mxu0
    %v103 = vadd.f32 %v50, %v97
    %v104 = vadd.f32 %v51, %v100
    %vm105 = vcmask 130048
    %106 = vst.msk [vmem:[#allocation2] sm:$0xff] %vm105, %v103
    %107 = vst.msk [vmem:[#allocation2 + $0x8] sm:$0xff] %vm105, %v104
    // Predicated region
    $region22: #{tpu_custom_call.1} parent=1 // pred_check
      %p108 = pneg %p41
    $region23: #{tpu_custom_call.1} parent=1 // pred_check_branch
      %110 = sbr.rel (%p108) target = $region25
    $region24: #{tpu_custom_call.1} parent=1 // pred_region
      %v111 = vld [vmem:[#allocation2] sm:$0xff]
      %v112 = vld [vmem:[#allocation2 + $0x8] sm:$0xff]
      %v113 = vmul.f32 %v111, 0.00048828125
      %v114 = vmul.f32 %v112, 0.00048828125
      %v115 = vld [vmem:[#allocation6] sm:$0xff]
      %v116 = vld [vmem:[#allocation6 + $0x8] sm:$0xff]
      %v117 = vsub.f32 %v113, %v115
      %v118 = vsub.f32 %v114, %v116
      %v119 = vmul.f32 %v117, %v117
      %v120 = vmul.f32 %v118, %v118
      %v121 = vsel %vm105, %v119, 0.0
      %v122 = vsel %vm105, %v120, 0.0
      %v123 = vadd.f32 %v121, %v122
      %124 = vadd.xlane.f32.xlu0 %v123
      %v125 = vpop.xlane.xlu0 %124
      %v126 = vrot.slane %v125, 4
      %v127 = vadd.f32 %v125, %v126
      %v128 = vrot.slane %v127, 2
      %v129 = vadd.f32 %v127, %v128
      %v130 = vrot.slane %v129, 1
      %v131 = vadd.f32 %v129, %v130
      %s132 = vtos %v131
      %s133 = smul.f32 %s132, 0.015625
      %v134 = vstv %s133
      %v135 = vadd.f32 %v134, 0.0
      %136 = vst [vmem:[#allocation8] sm:$0xff] %v135
    $region25: #{tpu_custom_call.1} parent=1 // pred_fallthru
      _
    // Predicated region
    $region26: #{tpu_custom_call.1} parent=1 // pred_check
      _
    $region27: #{tpu_custom_call.1} parent=1 // pred_check_branch
      %138 = sbr.rel (0) target = $region29
    $region28: #{tpu_custom_call.1} parent=1 // pred_region
      %s140 = ssub.s32 128, 128
      %141 = vsyncadd [#allocation5], %s140
      %s143 = sshll.u32 [#allocation8], 4
      %s144 = int_to_ptr.vmem [resolvable:$true] %s143
      %146 = dma.vmem_to_hbm [thread:$0]  %s144, 128, %s2, [#allocation5]
    $region29: #{tpu_custom_call.1} parent=1 // pred_fallthru
      _
    // Predicated region
    $region30: #{tpu_custom_call.1} parent=1 // pred_check
      _
    $region31: #{tpu_custom_call.1} parent=1 // pred_check_branch
      %148 = sbr.rel (0) target = $region33
    $region32: #{tpu_custom_call.1} parent=1 // pred_region
      %149 = dma.done [#allocation5], 128
    $region33: #{tpu_custom_call.1} parent=1 // pred_fallthru
      _
    %150 = vsyncpa [#allocation4], 1
    %151 = vsyncpa [#allocation7], 1
    %152 = vsyncpa [#allocation5], 1

</llo_original>
